<compile_context>
chip_gen: v7x
topology: tpu7x:2x2x1
jax: 0.10.0
libtpu: 0.0.40
codegen_flags: <defaults>
</compile_context>

<pallas_src>
import jax
import jax.numpy as jnp
from jax.experimental import pallas as pl
from jax.experimental.pallas import tpu as pltpu

# ----------------------------- "config" ------------------------------------
TASK_EMBEDDING_DIM = 32          # config.task_embedding_dim
TASK_HIDDEN_DIM = 64             # config.task_hidden_dim
PROJ_DIM = 64                    # config.projected_task_embedding_dim
INPUT_DIM = 32                   # config.input_dim
REDUCTION_FACTOR = 4             # config.reduction_factor
DOWN_SAMPLE = INPUT_DIM // REDUCTION_FACTOR
NUM_LAYERS = 6
LN_EPS = 1e-6
# add_layer_norm_before_adapter = add_layer_norm_after_adapter = True
# unique_hyper_net_layer_norm = True

LANE = 128
NROWS = 8                        # NUM_LAYERS padded to a sublane multiple
VEC_W = max(TASK_HIDDEN_DIM, PROJ_DIM)

# (name, generator output length, reshape target) -- big 256-wide weight chunks
# first so each starts on a 128-lane boundary, small vectors packed at the tail.
GEN_LAYOUT = [
    ("ff_down_weight", DOWN_SAMPLE * INPUT_DIM, (DOWN_SAMPLE, INPUT_DIM)),
    ("ff_up_weight", INPUT_DIM * DOWN_SAMPLE, (INPUT_DIM, DOWN_SAMPLE)),
    ("sa_down_weight", DOWN_SAMPLE * INPUT_DIM, (DOWN_SAMPLE, INPUT_DIM)),
    ("sa_up_weight", INPUT_DIM * DOWN_SAMPLE, (INPUT_DIM, DOWN_SAMPLE)),
    ("ff_down_bias", DOWN_SAMPLE, (DOWN_SAMPLE,)),
    ("ff_up_bias", INPUT_DIM, (INPUT_DIM,)),
    ("sa_down_bias", DOWN_SAMPLE, (DOWN_SAMPLE,)),
    ("sa_up_bias", INPUT_DIM, (INPUT_DIM,)),
    ("ff_pre_norm_weight", INPUT_DIM, (INPUT_DIM,)),
    ("ff_pre_norm_bias", INPUT_DIM, (INPUT_DIM,)),
    ("sa_pre_norm_weight", INPUT_DIM, (INPUT_DIM,)),
    ("sa_pre_norm_bias", INPUT_DIM, (INPUT_DIM,)),
    ("ff_post_norm_weight", INPUT_DIM, (INPUT_DIM,)),
    ("ff_post_norm_bias", INPUT_DIM, (INPUT_DIM,)),
    ("sa_post_norm_weight", INPUT_DIM, (INPUT_DIM,)),
    ("sa_post_norm_bias", INPUT_DIM, (INPUT_DIM,)),
]
TOTAL = sum(n for _, n, _ in GEN_LAYOUT)                      # 1360

N_COL_TILES = 2                                               # v7x: one per TC


def _round_up(x, m):
    return (x + m - 1) // m * m


TOTAL_PAD = _round_up(TOTAL, N_COL_TILES * LANE)              # 1536
COL_TILE = TOTAL_PAD // N_COL_TILES                           # 768 (= 6 * 128)


# ----------------------------- Pallas kernel --------------------------------
def fused_hypernet_kernel(task_ref, layers_ref, w1_ref, w2_ref, vec_ref,
                          genw_ref, genb_ref, out_ref):
    """TaskHyperNet + LayerNorm + all generator linears, batched over NROWS layer
    rows, for one 768-wide column tile of the concatenated generator output."""
    # --- TaskHyperNet: concat(task, layer) @ W1 == task @ W1[:D] + layer @ W1[D:]
    w1 = w1_ref[...]                                           # (2D, H)
    w1_task = w1[:TASK_EMBEDDING_DIM, :]
    w1_layer = w1[TASK_EMBEDDING_DIM:, :]
    vecs = vec_ref[...]                                        # (4, VEC_W)
    b1 = vecs[0:1, :TASK_HIDDEN_DIM]
    b2 = vecs[1:2, :PROJ_DIM]
    ln_w = vecs[2:3, :PROJ_DIM]
    ln_b = vecs[3:4, :PROJ_DIM]

    h = (jnp.dot(task_ref[...], w1_task, preferred_element_type=jnp.float32)
         + jnp.dot(layers_ref[...], w1_layer, preferred_element_type=jnp.float32)
         + b1)                                                 # (NROWS, H)
    h = jnp.maximum(h, 0.0)                                    # ReLU
    e = jnp.dot(h, w2_ref[...], preferred_element_type=jnp.float32) + b2  # (NROWS, P)

    # --- LayerNorm(eps=1e-6), population variance (matches torch.nn.LayerNorm)
    mean = jnp.mean(e, axis=-1, keepdims=True)
    var = jnp.mean((e - mean) ** 2, axis=-1, keepdims=True)
    e = (e - mean) * jax.lax.rsqrt(var + LN_EPS) * ln_w + ln_b

    # --- all generators fused: (NROWS, P) @ (P, COL_TILE) + (1, COL_TILE)
    out_ref[...] = (jnp.dot(e, genw_ref[...], preferred_element_type=jnp.float32)
                    + genb_ref[...])


def _const_spec(shape):
    # full-array block, same block every grid step (no re-DMA between steps)
    return pl.BlockSpec(shape, lambda j: tuple(0 for _ in shape))


def run_hypernet(task_row, layers_pad, w1, w2, vec_pack, gen_w, gen_b):
    return pl.pallas_call(
        fused_hypernet_kernel,
        out_shape=jax.ShapeDtypeStruct((NROWS, TOTAL_PAD), jnp.float32),
        grid=(N_COL_TILES,),
        in_specs=[
            _const_spec(task_row.shape),                       # (1, D)
            _const_spec(layers_pad.shape),                     # (NROWS, D)
            _const_spec(w1.shape),                             # (2D, H)
            _const_spec(w2.shape),                             # (H, P)
            _const_spec(vec_pack.shape),                       # (4, VEC_W)
            pl.BlockSpec((PROJ_DIM, COL_TILE), lambda j: (0, j)),
            pl.BlockSpec((1, COL_TILE), lambda j: (0, j)),
        ],
        out_specs=pl.BlockSpec((NROWS, COL_TILE), lambda j: (0, j)),
        compiler_params=pltpu.CompilerParams(
            dimension_semantics=("parallel",)),                # 2 TCs on v7x
    )(task_row, layers_pad, w1, w2, vec_pack, gen_w, gen_b)


# ----------------------------- parameter init ------------------------------
def _linear_params(key, in_dim, out_dim, std=0.01):
    """Matches init_linear_layer: weight ~ N(0, std), bias = 0.
    Stored as (in_dim, out_dim) so forward is x @ W."""
    w = std * jax.random.normal(key, (in_dim, out_dim), dtype=jnp.float32)
    b = jnp.zeros((1, out_dim), dtype=jnp.float32)
    return w, b


def init_params(key):
    ks = jax.random.split(key, 4 + len(GEN_LAYOUT))
    params = {}

    # nn.Embedding default init: N(0, 1); padded to NROWS sublane rows.
    layer_tab = jax.random.normal(
        ks[0], (NUM_LAYERS, TASK_EMBEDDING_DIM), dtype=jnp.float32)
    params["layer_id_embeddings"] = (
        jnp.zeros((NROWS, TASK_EMBEDDING_DIM), jnp.float32)
        .at[:NUM_LAYERS].set(layer_tab))

    # TaskHyperNet (input dim doubled because config.task_embedding_dim *= 2)
    params["task_w1"], b1 = _linear_params(
        ks[1], 2 * TASK_EMBEDDING_DIM, TASK_HIDDEN_DIM)
    params["task_w2"], b2 = _linear_params(ks[2], TASK_HIDDEN_DIM, PROJ_DIM)

    # unique_hyper_net_layer_norm params + hypernet biases packed into one array
    ln_w = jnp.ones((1, PROJ_DIM), jnp.float32)
    ln_b = jnp.zeros((1, PROJ_DIM), jnp.float32)

    def _padrow(v):
        return jnp.zeros((1, VEC_W), jnp.float32).at[:, :v.shape[1]].set(v)

    params["vec_pack"] = jnp.concatenate(
        [_padrow(b1), _padrow(b2), _padrow(ln_w), _padrow(ln_b)], axis=0)

    # all generator linears, concatenated along output axis, zero-padded to 1536
    w_blocks, b_blocks = [], []
    for i, (_, out_len, _) in enumerate(GEN_LAYOUT):
        w, b = _linear_params(ks[4 + i], PROJ_DIM, out_len)
        w_blocks.append(w)
        b_blocks.append(b)
    pad = TOTAL_PAD - TOTAL
    w_blocks.append(jnp.zeros((PROJ_DIM, pad), jnp.float32))
    b_blocks.append(jnp.zeros((1, pad), jnp.float32))
    params["gen_w_all"] = jnp.concatenate(w_blocks, axis=1)    # (P, TOTAL_PAD)
    params["gen_b_all"] = jnp.concatenate(b_blocks, axis=1)    # (1, TOTAL_PAD)
    return params


# ----------------------------- forward --------------------------------------
@jax.jit
def forward_all(params, task_embedding):
    """Generates adapter weights / biases / LN params for ALL layers at once.

    task_embedding: (TASK_EMBEDDING_DIM,) float32
    Returns dict name -> (NUM_LAYERS, *shape).
    """
    task_row = task_embedding.reshape(1, TASK_EMBEDDING_DIM)
    gen = run_hypernet(
        task_row,
        params["layer_id_embeddings"],
        params["task_w1"], params["task_w2"], params["vec_pack"],
        params["gen_w_all"], params["gen_b_all"],
    )                                                          # (NROWS, TOTAL_PAD)
    gen = gen[:NUM_LAYERS]                                     # drop pad rows
    out = {}
    off = 0
    for name, out_len, shape in GEN_LAYOUT:
        out[name] = gen[:, off:off + out_len].reshape((NUM_LAYERS,) + shape)
        off += out_len
    return out


def forward(params, task_embedding, layer_id):
    """Mirrors AdapterLayersHyperNetController.forward for a single layer_id."""
    all_out = forward_all(params, task_embedding)
    return {k: v[layer_id] for k, v in all_out.items()}


# pure-JAX reference for a sanity check (same math as the PyTorch module)
def forward_ref(params, task_embedding, layer_id):
    layer_emb = params["layer_id_embeddings"][layer_id]
    w1 = params["task_w1"]
    vecs = params["vec_pack"]
    b1 = vecs[0, :TASK_HIDDEN_DIM]
    b2 = vecs[1, :PROJ_DIM]
    ln_w = vecs[2, :PROJ_DIM]
    ln_b = vecs[3, :PROJ_DIM]

    h = (task_embedding @ w1[:TASK_EMBEDDING_DIM]
         + layer_emb @ w1[TASK_EMBEDDING_DIM:] + b1)
    h = jnp.maximum(h, 0.0)
    e = h @ params["task_w2"] + b2
    mean = jnp.mean(e)
    var = jnp.mean((e - mean) ** 2)
    e = (e - mean) * jax.lax.rsqrt(var + LN_EPS) * ln_w + ln_b
    gen = e @ params["gen_w_all"] + params["gen_b_all"][0]
    out = {}
    off = 0
    for name, out_len, shape in GEN_LAYOUT:
        out[name] = gen[off:off + out_len].reshape(shape)
        off += out_len
    return out


# ----------------------------- main -----------------------------------------
if __name__ == "__main__":
    key = jax.random.PRNGKey(0)
    pkey, xkey = jax.random.split(key)
    params = init_params(pkey)
    task_embedding = jax.random.normal(
        xkey, (TASK_EMBEDDING_DIM,), dtype=jnp.float32)

    # one fused kernel invocation generates every layer's adapter parameters
    all_out = forward_all(params, task_embedding)
    all_out = jax.tree_util.tree_map(jax.block_until_ready, all_out)

    # check the per-layer API against the pure-JAX reference for all layers
    for layer_id in range(NUM_LAYERS):
        out = forward(params, task_embedding, layer_id)
        ref = forward_ref(params, task_embedding, layer_id)
        for name in ref:
            assert out[name].shape == ref[name].shape, (layer_id, name)
            assert jnp.allclose(out[name], ref[name], atol=1e-5, rtol=1e-5), (
                layer_id, name)

    print("KERNEL_OK")
</pallas_src>

<mosaic_0001>
module attributes {stable_mosaic.version = 11 : i64} {
  func.func @fused_hypernet_kernel(%arg0: i32, %arg1: memref<1x32xf32, #tpu.memory_space<vmem>>, %arg2: memref<8x32xf32, #tpu.memory_space<vmem>>, %arg3: memref<64x64xf32, #tpu.memory_space<vmem>>, %arg4: memref<64x64xf32, #tpu.memory_space<vmem>>, %arg5: memref<4x64xf32, #tpu.memory_space<vmem>>, %arg6: memref<64x768xf32, #tpu.memory_space<vmem>>, %arg7: memref<1x768xf32, #tpu.memory_space<vmem>>, %arg8: memref<8x768xf32, #tpu.memory_space<vmem>>) attributes {dimension_semantics = [#tpu.dimension_semantics<parallel>], iteration_bounds = array<i64: 2>, scalar_prefetch = 0 : i64, scratch_operands = 0 : i64, tpu.core_type = #tpu.core_type<tc>, window_params = [{pipeline_mode = #tpu.pipeline_mode<synchronous>, transform_indices = @transform_0, window_bounds = array<i64: 1, 32>}, {pipeline_mode = #tpu.pipeline_mode<synchronous>, transform_indices = @transform_1, window_bounds = array<i64: 8, 32>}, {pipeline_mode = #tpu.pipeline_mode<synchronous>, transform_indices = @transform_2, window_bounds = array<i64: 64, 64>}, {pipeline_mode = #tpu.pipeline_mode<synchronous>, transform_indices = @transform_3, window_bounds = array<i64: 64, 64>}, {pipeline_mode = #tpu.pipeline_mode<synchronous>, transform_indices = @transform_4, window_bounds = array<i64: 4, 64>}, {transform_indices = @transform_5, window_bounds = array<i64: 64, 768>}, {transform_indices = @transform_6, window_bounds = array<i64: 1, 768>}, {transform_indices = @transform_7, window_bounds = array<i64: 8, 768>}]} {
    %c0 = arith.constant 0 : index
    %c0_0 = arith.constant 0 : index
    %0 = vector.load %arg3[%c0, %c0_0] : memref<64x64xf32, #tpu.memory_space<vmem>>, vector<64x64xf32>
    %1 = vector.extract_strided_slice %0 {offsets = [0, 0], sizes = [32, 64], strides = [1, 1]} : vector<64x64xf32> to vector<32x64xf32>
    %2 = vector.extract_strided_slice %0 {offsets = [32, 0], sizes = [32, 64], strides = [1, 1]} : vector<64x64xf32> to vector<32x64xf32>
    %c0_1 = arith.constant 0 : index
    %c0_2 = arith.constant 0 : index
    %3 = vector.load %arg5[%c0_1, %c0_2] : memref<4x64xf32, #tpu.memory_space<vmem>>, vector<4x64xf32>
    %4 = vector.extract_strided_slice %3 {offsets = [0, 0], sizes = [1, 64], strides = [1, 1]} : vector<4x64xf32> to vector<1x64xf32>
    %5 = vector.extract_strided_slice %3 {offsets = [1, 0], sizes = [1, 64], strides = [1, 1]} : vector<4x64xf32> to vector<1x64xf32>
    %6 = vector.extract_strided_slice %3 {offsets = [2, 0], sizes = [1, 64], strides = [1, 1]} : vector<4x64xf32> to vector<1x64xf32>
    %7 = vector.extract_strided_slice %3 {offsets = [3, 0], sizes = [1, 64], strides = [1, 1]} : vector<4x64xf32> to vector<1x64xf32>
    %c0_3 = arith.constant 0 : index
    %c0_4 = arith.constant 0 : index
    %8 = vector.load %arg1[%c0_3, %c0_4] : memref<1x32xf32, #tpu.memory_space<vmem>>, vector<1x32xf32>
    %cst = arith.constant dense<0.000000e+00> : vector<1x64xf32>
    %9 = tpu.matmul %8, %1, %cst {dimension_numbers = #tpu.dot_dimension_numbers<[1], [0], [0], [1], [0, 0, 1, 1], [], []>} : vector<1x32xf32>, vector<32x64xf32>, vector<1x64xf32> -> vector<1x64xf32>
    %c0_5 = arith.constant 0 : index
    %c0_6 = arith.constant 0 : index
    %10 = vector.load %arg2[%c0_5, %c0_6] : memref<8x32xf32, #tpu.memory_space<vmem>>, vector<8x32xf32>
    %cst_7 = arith.constant dense<0.000000e+00> : vector<8x64xf32>
    %11 = tpu.matmul %10, %2, %cst_7 {dimension_numbers = #tpu.dot_dimension_numbers<[1], [0], [0], [1], [0, 0, 1, 1], [], []>} : vector<8x32xf32>, vector<32x64xf32>, vector<8x64xf32> -> vector<8x64xf32>
    %12 = vector.broadcast %9 : vector<1x64xf32> to vector<8x64xf32>
    %13 = arith.addf %12, %11 : vector<8x64xf32>
    %14 = vector.broadcast %4 : vector<1x64xf32> to vector<8x64xf32>
    %15 = arith.addf %13, %14 : vector<8x64xf32>
    %cst_8 = arith.constant 0.000000e+00 : f32
    %16 = vector.broadcast %cst_8 : f32 to vector<8x64xf32>
    %17 = arith.maximumf %15, %16 : vector<8x64xf32>
    %c0_9 = arith.constant 0 : index
    %c0_10 = arith.constant 0 : index
    %18 = vector.load %arg4[%c0_9, %c0_10] : memref<64x64xf32, #tpu.memory_space<vmem>>, vector<64x64xf32>
    %cst_11 = arith.constant dense<0.000000e+00> : vector<8x64xf32>
    %19 = tpu.matmul %17, %18, %cst_11 {dimension_numbers = #tpu.dot_dimension_numbers<[1], [0], [0], [1], [0, 0, 1, 1], [], []>} : vector<8x64xf32>, vector<64x64xf32>, vector<8x64xf32> -> vector<8x64xf32>
    %20 = vector.broadcast %5 : vector<1x64xf32> to vector<8x64xf32>
    %21 = arith.addf %19, %20 : vector<8x64xf32>
    %cst_12 = arith.constant dense<0.000000e+00> : vector<8xf32>
    %22 = vector.multi_reduction <add>, %21, %cst_12 [1] : vector<8x64xf32> to vector<8xf32>
    %23 = vector.shape_cast %22 : vector<8xf32> to vector<8x1xf32>
    %cst_13 = arith.constant 6.400000e+01 : f32
    %24 = vector.broadcast %cst_13 : f32 to vector<8x1xf32>
    %25 = arith.divf %23, %24 : vector<8x1xf32>
    %26 = vector.broadcast %25 : vector<8x1xf32> to vector<8x64xf32>
    %27 = arith.subf %21, %26 : vector<8x64xf32>
    %28 = arith.mulf %27, %27 : vector<8x64xf32>
    %cst_14 = arith.constant dense<0.000000e+00> : vector<8xf32>
    %29 = vector.multi_reduction <add>, %28, %cst_14 [1] : vector<8x64xf32> to vector<8xf32>
    %30 = vector.shape_cast %29 : vector<8xf32> to vector<8x1xf32>
    %cst_15 = arith.constant 6.400000e+01 : f32
    %31 = vector.broadcast %cst_15 : f32 to vector<8x1xf32>
    %32 = arith.divf %30, %31 : vector<8x1xf32>
    %33 = vector.broadcast %25 : vector<8x1xf32> to vector<8x64xf32>
    %34 = arith.subf %21, %33 : vector<8x64xf32>
    %cst_16 = arith.constant 9.99999997E-7 : f32
    %35 = vector.broadcast %cst_16 : f32 to vector<8x1xf32>
    %36 = arith.addf %32, %35 : vector<8x1xf32>
    %37 = math.rsqrt %36 : vector<8x1xf32>
    %38 = vector.broadcast %37 : vector<8x1xf32> to vector<8x64xf32>
    %39 = arith.mulf %34, %38 : vector<8x64xf32>
    %40 = vector.broadcast %6 : vector<1x64xf32> to vector<8x64xf32>
    %41 = arith.mulf %39, %40 : vector<8x64xf32>
    %42 = vector.broadcast %7 : vector<1x64xf32> to vector<8x64xf32>
    %43 = arith.addf %41, %42 : vector<8x64xf32>
    %c0_17 = arith.constant 0 : index
    %c0_18 = arith.constant 0 : index
    %44 = vector.load %arg6[%c0_17, %c0_18] : memref<64x768xf32, #tpu.memory_space<vmem>>, vector<64x768xf32>
    %cst_19 = arith.constant dense<0.000000e+00> : vector<8x768xf32>
    %45 = tpu.matmul %43, %44, %cst_19 {dimension_numbers = #tpu.dot_dimension_numbers<[1], [0], [0], [1], [0, 0, 1, 1], [], []>} : vector<8x64xf32>, vector<64x768xf32>, vector<8x768xf32> -> vector<8x768xf32>
    %c0_20 = arith.constant 0 : index
    %c0_21 = arith.constant 0 : index
    %46 = vector.load %arg7[%c0_20, %c0_21] : memref<1x768xf32, #tpu.memory_space<vmem>>, vector<1x768xf32>
    %47 = vector.broadcast %46 : vector<1x768xf32> to vector<8x768xf32>
    %48 = arith.addf %45, %47 : vector<8x768xf32>
    %c0_22 = arith.constant 0 : index
    %c0_23 = arith.constant 0 : index
    %49 = vector.load %arg8[%c0_22, %c0_23] : memref<8x768xf32, #tpu.memory_space<vmem>>, vector<8x768xf32>
    tpu.vector_store %arg8[%c0_22, %c0_23], %48 {strides = array<i32>} : memref<8x768xf32, #tpu.memory_space<vmem>>, vector<8x768xf32>,
    return
  }
  func.func @transform_0(%arg0: i32) -> (i32, i32) {
    %c0_i32 = arith.constant 0 : i32
    %c0_i32_0 = arith.constant 0 : i32
    %c0_i32_1 = arith.constant 0 : i32
    return %c0_i32, %c0_i32_0 : i32, i32
  }
  func.func @transform_1(%arg0: i32) -> (i32, i32) {
    %c0_i32 = arith.constant 0 : i32
    %c0_i32_0 = arith.constant 0 : i32
    %c0_i32_1 = arith.constant 0 : i32
    return %c0_i32, %c0_i32_0 : i32, i32
  }
  func.func @transform_2(%arg0: i32) -> (i32, i32) {
    %c0_i32 = arith.constant 0 : i32
    %c0_i32_0 = arith.constant 0 : i32
    %c0_i32_1 = arith.constant 0 : i32
    return %c0_i32, %c0_i32_0 : i32, i32
  }
  func.func @transform_3(%arg0: i32) -> (i32, i32) {
    %c0_i32 = arith.constant 0 : i32
    %c0_i32_0 = arith.constant 0 : i32
    %c0_i32_1 = arith.constant 0 : i32
    return %c0_i32, %c0_i32_0 : i32, i32
  }
  func.func @transform_4(%arg0: i32) -> (i32, i32) {
    %c0_i32 = arith.constant 0 : i32
    %c0_i32_0 = arith.constant 0 : i32
    %c0_i32_1 = arith.constant 0 : i32
    return %c0_i32, %c0_i32_0 : i32, i32
  }
  func.func @transform_5(%arg0: i32) -> (i32, i32) {
    %c0_i32 = arith.constant 0 : i32
    %c0_i32_0 = arith.constant 0 : i32
    return %c0_i32, %arg0 : i32, i32
  }
  func.func @transform_6(%arg0: i32) -> (i32, i32) {
    %c0_i32 = arith.constant 0 : i32
    %c0_i32_0 = arith.constant 0 : i32
    return %c0_i32, %arg0 : i32, i32
  }
  func.func @transform_7(%arg0: i32) -> (i32, i32) {
    %c0_i32 = arith.constant 0 : i32
    %c0_i32_0 = arith.constant 0 : i32
    return %c0_i32, %arg0 : i32, i32
  }
}

</mosaic_0001>

<llo_original>
// kernel: forward_all.1
$region0: #{forward_all.1}
  #allocation0 [shape = 'u32[]', space=smem, size = 0x4, offset = 0x4, fixed_abs, tag = 'smem constant byte address 0x4 - core index']
  #allocation1 [shape = 'u32[144,128]{1,0:T(1,128)}', space=vmem, size = 0x12000, scoped, tag = 'internal scratch']
  %s0 = inlined_call_operand.vmem [shape: f32[1,32], index: 0, kind: input, shape index: {}]
  %s1 = inlined_call_operand.vmem [shape: f32[8,32], index: 1, kind: input, shape index: {}]
  %s2 = inlined_call_operand.hbm [shape: f32[64,64], index: 2, kind: input, shape index: {}]
  %s3 = inlined_call_operand.hbm [shape: f32[64,64], index: 3, kind: input, shape index: {}]
  %s4 = inlined_call_operand.vmem [shape: f32[4,64], index: 4, kind: input, shape index: {}]
  %s5 = inlined_call_operand.hbm [shape: f32[64,1536], index: 5, kind: input, shape index: {}]
  %s6 = inlined_call_operand.hbm [shape: f32[1,1536], index: 6, kind: input, shape index: {}]
  %s7 = inlined_call_operand.vmem [shape: f32[8,1536], index: 7, kind: output, shape index: {}]
  %s8 = sld [smem:[#allocation0]]
  $region77: #{forward_all.1} parent=0
    _
  %s10 = ssub.s32 1, %s8
  %s11 = scalar_select 0, %s10, %s8
  $region1: #{forward_all.1} parent=0
    #allocation2 [shape = 'u8[32768]{0}', space=vmem, size = 0x8000, scoped, tag = 'input window, operand 2, single buffered']
    #allocation3 [shape = 's32[2]{0}', space=sflag, size = 0x8, scoped, tag = 'scoped memory for forward_all.1']
    #allocation4 [shape = 'u8[32768]{0}', space=vmem, size = 0x8000, scoped, tag = 'input window, operand 3, single buffered']
    #allocation5 [shape = 's32[1]{0}', space=sflag, size = 0x4, scoped, tag = 'scoped memory for forward_all.1']
    #allocation6 [shape = 'u8[393216]{0}', space=vmem, size = 0x60000, scoped, tag = 'input window, operand 5']
    #allocation7 [shape = 'u8[6144]{0}', space=vmem, size = 0x1800, scoped, tag = 'input window, operand 6']
    %12 = vsyncpa [#allocation3], 0
    %13 = vsyncpa [#allocation5], 0
    loop: start=0, step=1, limit=4
    $region2: #{forward_all.1} parent=1 // loop_pre_header
      _
    $region3: #{forward_all.1} parent=1 // loop_header
      %s15 = sphi 0, %s19
      %p16 = scmp.ge.s32.totalorder %s15, 4
      %s23 = sphi 0, %s23
      %s25 = sphi 0, %s23
      %s26 = sphi 0, %s25
      %s40 = sphi 0, %s26
      %s44 = sphi 0, %s44
      %s46 = sphi 0, %s44
      %s47 = sphi 0, %s46
      %s61 = sphi 0, %s47
      %s65 = sphi 0, %s65
      %s67 = sphi 0, %s65
      %s68 = sphi 0, %s67
      %s82 = sphi 0, %s68
      %s86 = sphi 0, %s86
      %s88 = sphi 0, %s86
      %s89 = sphi 0, %s88
      %s103 = sphi 0, %s89
      %s107 = sphi 0, %s107
      %s109 = sphi 0, %s107
      %s110 = sphi 0, %s109
      %s124 = sphi 0, %s110
      %s130 = sphi 0, %s132
      %s133 = sphi 0, %s130
      %s134 = sphi 0, %s133
      %s150 = sphi 0, %s134
      %s156 = sphi 0, %s158
      %s159 = sphi 0, %s156
      %s160 = sphi 0, %s159
      %s176 = sphi 0, %s160
      %s182 = sphi 0, %s184
      %s185 = sphi 0, %s182
      %s186 = sphi 0, %s185
      %s202 = sphi 0, %s186
    $region4: #{forward_all.1} parent=1 // loop_header_branch
      %18 = sbr.rel (%p16) target = $region8
    $region5: #{forward_all.1} parent=1 // loop_body
      %s20 = ssub.s32 %s15, 1
      %s21 = ssub.s32 %s15, 2
      %s22 = sadd.s32 %s15, 1
      %s24 = sadd.s32 %s23, 1
      %p27 = scmp.eq.s32.totalorder %s15, 1
      %p28 = scmp.ne.s32.totalorder %s23, %s25
      %p29 = scmp.eq.s32.totalorder %s15, 0
      %p30 = por %p28, %p29
      %p31 = scmp.ne.s32.totalorder %s23, %s25
      %p32 = scmp.eq.s32.totalorder %s20, 1
      %p33 = por %p31, %p32
      %p34 = scmp.ne.s32.totalorder %s25, %s26
      %p35 = scmp.eq.s32.totalorder %s20, 0
      %p36 = por %p34, %p35
      %p37 = scmp.ne.s32.totalorder %s25, %s26
      %p38 = scmp.eq.s32.totalorder %s21, 1
      %p39 = por %p37, %p38
      %p41 = scmp.ne.s32.totalorder %s26, %s40
      %p42 = scmp.eq.s32.totalorder %s21, 0
      %p43 = por %p41, %p42
      %s45 = sadd.s32 %s44, 1
      %p48 = scmp.eq.s32.totalorder %s15, 1
      %p49 = scmp.ne.s32.totalorder %s44, %s46
      %p50 = scmp.eq.s32.totalorder %s15, 0
      %p51 = por %p49, %p50
      %p52 = scmp.ne.s32.totalorder %s44, %s46
      %p53 = scmp.eq.s32.totalorder %s20, 1
      %p54 = por %p52, %p53
      %p55 = scmp.ne.s32.totalorder %s46, %s47
      %p56 = scmp.eq.s32.totalorder %s20, 0
      %p57 = por %p55, %p56
      %p58 = scmp.ne.s32.totalorder %s46, %s47
      %p59 = scmp.eq.s32.totalorder %s21, 1
      %p60 = por %p58, %p59
      %p62 = scmp.ne.s32.totalorder %s47, %s61
      %p63 = scmp.eq.s32.totalorder %s21, 0
      %p64 = por %p62, %p63
      %s66 = sadd.s32 %s65, 1
      %p69 = scmp.eq.s32.totalorder %s15, 1
      %p70 = scmp.ne.s32.totalorder %s65, %s67
      %p71 = scmp.eq.s32.totalorder %s15, 0
      %p72 = por %p70, %p71
      %p73 = scmp.ne.s32.totalorder %s65, %s67
      %p74 = scmp.eq.s32.totalorder %s20, 1
      %p75 = por %p73, %p74
      %p76 = scmp.ne.s32.totalorder %s67, %s68
      %p77 = scmp.eq.s32.totalorder %s20, 0
      %p78 = por %p76, %p77
      %p79 = scmp.ne.s32.totalorder %s67, %s68
      %p80 = scmp.eq.s32.totalorder %s21, 1
      %p81 = por %p79, %p80
      %p83 = scmp.ne.s32.totalorder %s68, %s82
      %p84 = scmp.eq.s32.totalorder %s21, 0
      %p85 = por %p83, %p84
      %s87 = sadd.s32 %s86, 1
      %p90 = scmp.eq.s32.totalorder %s15, 1
      %p91 = scmp.ne.s32.totalorder %s86, %s88
      %p92 = scmp.eq.s32.totalorder %s15, 0
      %p93 = por %p91, %p92
      %p94 = scmp.ne.s32.totalorder %s86, %s88
      %p95 = scmp.eq.s32.totalorder %s20, 1
      %p96 = por %p94, %p95
      %p97 = scmp.ne.s32.totalorder %s88, %s89
      %p98 = scmp.eq.s32.totalorder %s20, 0
      %p99 = por %p97, %p98
      %p100 = scmp.ne.s32.totalorder %s88, %s89
      %p101 = scmp.eq.s32.totalorder %s21, 1
      %p102 = por %p100, %p101
      %p104 = scmp.ne.s32.totalorder %s89, %s103
      %p105 = scmp.eq.s32.totalorder %s21, 0
      %p106 = por %p104, %p105
      %s108 = sadd.s32 %s107, 1
      %p111 = scmp.eq.s32.totalorder %s15, 1
      %p112 = scmp.ne.s32.totalorder %s107, %s109
      %p113 = scmp.eq.s32.totalorder %s15, 0
      %p114 = por %p112, %p113
      %p115 = scmp.ne.s32.totalorder %s107, %s109
      %p116 = scmp.eq.s32.totalorder %s20, 1
      %p117 = por %p115, %p116
      %p118 = scmp.ne.s32.totalorder %s109, %s110
      %p119 = scmp.eq.s32.totalorder %s20, 0
      %p120 = por %p118, %p119
      %p121 = scmp.ne.s32.totalorder %s109, %s110
      %p122 = scmp.eq.s32.totalorder %s21, 1
      %p123 = por %p121, %p122
      %p125 = scmp.ne.s32.totalorder %s110, %s124
      %p126 = scmp.eq.s32.totalorder %s21, 0
      %p127 = por %p125, %p126
      %s128 = ssub.s32 %s15, %s22
      %p129 = scmp.eq.s32.totalorder %s128, 0
      %s131 = sadd.s32 %s130, 1
      %s132 = scalar_select %p129, %s130, %s131
      %p135 = pneg %p129
      %p136 = scmp.eq.s32.totalorder %s15, 1
      %p137 = por %p135, %p136
      %p138 = scmp.ne.s32.totalorder %s130, %s133
      %p139 = scmp.eq.s32.totalorder %s15, 0
      %p140 = por %p138, %p139
      %p141 = scmp.ne.s32.totalorder %s130, %s133
      %p142 = scmp.eq.s32.totalorder %s20, 1
      %p143 = por %p141, %p142
      %p144 = scmp.ne.s32.totalorder %s133, %s134
      %p145 = scmp.eq.s32.totalorder %s20, 0
      %p146 = por %p144, %p145
      %p147 = scmp.ne.s32.totalorder %s133, %s134
      %p148 = scmp.eq.s32.totalorder %s21, 1
      %p149 = por %p147, %p148
      %p151 = scmp.ne.s32.totalorder %s134, %s150
      %p152 = scmp.eq.s32.totalorder %s21, 0
      %p153 = por %p151, %p152
      %s154 = ssub.s32 %s15, %s22
      %p155 = scmp.eq.s32.totalorder %s154, 0
      %s157 = sadd.s32 %s156, 1
      %s158 = scalar_select %p155, %s156, %s157
      %p161 = pneg %p155
      %p162 = scmp.eq.s32.totalorder %s15, 1
      %p163 = por %p161, %p162
      %p164 = scmp.ne.s32.totalorder %s156, %s159
      %p165 = scmp.eq.s32.totalorder %s15, 0
      %p166 = por %p164, %p165
      %p167 = scmp.ne.s32.totalorder %s156, %s159
      %p168 = scmp.eq.s32.totalorder %s20, 1
      %p169 = por %p167, %p168
      %p170 = scmp.ne.s32.totalorder %s159, %s160
      %p171 = scmp.eq.s32.totalorder %s20, 0
      %p172 = por %p170, %p171
      %p173 = scmp.ne.s32.totalorder %s159, %s160
      %p174 = scmp.eq.s32.totalorder %s21, 1
      %p175 = por %p173, %p174
      %p177 = scmp.ne.s32.totalorder %s160, %s176
      %p178 = scmp.eq.s32.totalorder %s21, 0
      %p179 = por %p177, %p178
      %s180 = ssub.s32 %s15, %s22
      %p181 = scmp.eq.s32.totalorder %s180, 0
      %s183 = sadd.s32 %s182, 1
      %s184 = scalar_select %p181, %s182, %s183
      %p187 = pneg %p181
      %p188 = scmp.eq.s32.totalorder %s15, 1
      %p189 = por %p187, %p188
      %p190 = scmp.ne.s32.totalorder %s182, %s185
      %p191 = scmp.eq.s32.totalorder %s15, 0
      %p192 = por %p190, %p191
      %p193 = scmp.ne.s32.totalorder %s182, %s185
      %p194 = scmp.eq.s32.totalorder %s20, 1
      %p195 = por %p193, %p194
      %p196 = scmp.ne.s32.totalorder %s185, %s186
      %p197 = scmp.eq.s32.totalorder %s20, 0
      %p198 = por %p196, %p197
      %p199 = scmp.ne.s32.totalorder %s185, %s186
      %p200 = scmp.eq.s32.totalorder %s21, 1
      %p201 = por %p199, %p200
      %p203 = scmp.ne.s32.totalorder %s186, %s202
      %p204 = scmp.eq.s32.totalorder %s21, 0
      %p205 = por %p203, %p204
      %p206 = scmp.le.s32.totalorder 1, %s15
      %p207 = scmp.lt.s32.totalorder %s15, 3
      %p208 = pnand %p206, %p207
      %p209 = pneg %p208
      // Predicated region
      $region9: #{forward_all.1} parent=5 // pred_check
        _
      $region10: #{forward_all.1} parent=5 // pred_check_branch
        %211 = sbr.rel (%p208) target = $region12
      $region11: #{forward_all.1} parent=5 // pred_region
        %s212 = ssub.s32 %s15, 1
        // Predicated region
        $region13: #{forward_all.1} parent=11 // pred_check
          %p213 = pneg %p36
        $region14: #{forward_all.1} parent=11 // pred_check_branch
          %215 = sbr.rel (%p213) target = $region16
        $region15: #{forward_all.1} parent=11 // pred_region
          _
        $region16: #{forward_all.1} parent=11 // pred_fallthru
          _
        // Predicated region
        $region17: #{forward_all.1} parent=11 // pred_check
          %p216 = pneg %p57
        $region18: #{forward_all.1} parent=11 // pred_check_branch
          %218 = sbr.rel (%p216) target = $region20
        $region19: #{forward_all.1} parent=11 // pred_region
          _
        $region20: #{forward_all.1} parent=11 // pred_fallthru
          _
        // Predicated region
        $region21: #{forward_all.1} parent=11 // pred_check
          %p219 = pneg %p78
        $region22: #{forward_all.1} parent=11 // pred_check_branch
          %221 = sbr.rel (%p219) target = $region24
        $region23: #{forward_all.1} parent=11 // pred_region
          %s223 = ssub.s32 1024, 1024
          %224 = vsyncadd [#allocation3], %s223
          %s225 = sshll.u32 [#allocation2], 4
          %s226 = int_to_ptr.vmem [resolvable:$true] %s225
          %231 = dma.hbm_to_vmem [thread:$0]  %s2, 1024, %s226, [#allocation3], 128, 128, 8
        $region24: #{forward_all.1} parent=11 // pred_fallthru
          _
        // Predicated region
        $region25: #{forward_all.1} parent=11 // pred_check
          %p232 = pneg %p99
        $region26: #{forward_all.1} parent=11 // pred_check_branch
          %234 = sbr.rel (%p232) target = $region28
        $region27: #{forward_all.1} parent=11 // pred_region
          %s236 = ssub.s32 1024, 1024
          %237 = vsyncadd [#allocation5], %s236
          %s238 = sshll.u32 [#allocation4], 4
          %s239 = int_to_ptr.vmem [resolvable:$true] %s238
          %244 = dma.hbm_to_vmem [thread:$0]  %s3, 1024, %s239, [#allocation5], 128, 128, 8
        $region28: #{forward_all.1} parent=11 // pred_fallthru
          _
        // Predicated region
        $region29: #{forward_all.1} parent=11 // pred_check
          %p245 = pneg %p120
        $region30: #{forward_all.1} parent=11 // pred_check_branch
          %247 = sbr.rel (%p245) target = $region32
        $region31: #{forward_all.1} parent=11 // pred_region
          _
        $region32: #{forward_all.1} parent=11 // pred_fallthru
          _
      $region12: #{forward_all.1} parent=5 // pred_fallthru
        _
      %p248 = scmp.lt.s32.totalorder %s15, 2
      // Predicated region
      $region33: #{forward_all.1} parent=5 // pred_check
        %p249 = pneg %p248
      $region34: #{forward_all.1} parent=5 // pred_check_branch
        %251 = sbr.rel (%p249) target = $region36
      $region35: #{forward_all.1} parent=5 // pred_region
        // Predicated region
        $region37: #{forward_all.1} parent=35 // pred_check
          %p252 = pneg %p140
        $region38: #{forward_all.1} parent=35 // pred_check_branch
          %254 = sbr.rel (%p252) target = $region40
        $region39: #{forward_all.1} parent=35 // pred_region
          %s255 = sand.u32 %s15, 1
          %s256 = scalar_lea.sflag [#allocation3], %s255
          %s257 = sand.u32 %s130, 1
          %s258 = smul.addr %s257, 384
          %s259 = scalar_lea.vmem [#allocation6], %s258
          %s260 = smul.u32 6, %s15
          %s262 = ssub.s32 6144, 6144
          %263 = vsyncadd %s256, %s262
          %s264 = smul.addr %s260, 128
          %s265 = scalar_lea.hbm %s5, %s264
          %s266 = sshll.u32 %s259, 4
          %s267 = int_to_ptr.vmem [resolvable:$true] %s266
          %272 = dma.hbm_to_vmem [thread:$0]  %s265, 6144, %s267, %s256, 1536, 768, 48
        $region40: #{forward_all.1} parent=35 // pred_fallthru
          _
        // Predicated region
        $region41: #{forward_all.1} parent=35 // pred_check
          %p273 = pneg %p166
        $region42: #{forward_all.1} parent=35 // pred_check_branch
          %275 = sbr.rel (%p273) target = $region44
        $region43: #{forward_all.1} parent=35 // pred_region
          %s276 = sand.u32 %s15, 1
          %s277 = scalar_lea.sflag [#allocation3], %s276
          %s278 = sand.u32 %s156, 1
          %s279 = smul.addr %s278, 6
          %s280 = scalar_lea.vmem [#allocation7], %s279
          %s281 = smul.u32 6, %s15
          %s283 = ssub.s32 96, 96
          %284 = vsyncadd %s277, %s283
          %s285 = smul.addr %s281, 16
          %s286 = scalar_lea.hbm %s6, %s285
          %s288 = sshll.u32 %s280, 4
          %s289 = int_to_ptr.vmem [resolvable:$true] %s288
          %291 = dma.hbm_to_vmem [thread:$0]  %s286, 96, %s289, %s277
        $region44: #{forward_all.1} parent=35 // pred_fallthru
          _
      $region36: #{forward_all.1} parent=5 // pred_fallthru
        _
      %p292 = scmp.le.s32.totalorder 1, %s15
      %p293 = scmp.lt.s32.totalorder %s15, 3
      %p294 = pnand %p292, %p293
      %p295 = pneg %p294
      // Predicated region
      $region45: #{forward_all.1} parent=5 // pred_check
        _
      $region46: #{forward_all.1} parent=5 // pred_check_branch
        %297 = sbr.rel (%p294) target = $region48
      $region47: #{forward_all.1} parent=5 // pred_region
        %s298 = ssub.s32 %s15, 1
        // Predicated region
        $region49: #{forward_all.1} parent=47 // pred_check
          %p299 = pneg %p78
        $region50: #{forward_all.1} parent=47 // pred_check_branch
          %301 = sbr.rel (%p299) target = $region52
        $region51: #{forward_all.1} parent=47 // pred_region
          %302 = dma.done [#allocation3], 1024
        $region52: #{forward_all.1} parent=47 // pred_fallthru
          _
        // Predicated region
        $region53: #{forward_all.1} parent=47 // pred_check
          %p303 = pneg %p99
        $region54: #{forward_all.1} parent=47 // pred_check_branch
          %305 = sbr.rel (%p303) target = $region56
        $region55: #{forward_all.1} parent=47 // pred_region
          %306 = dma.done [#allocation5], 1024
        $region56: #{forward_all.1} parent=47 // pred_fallthru
          _
        %s307 = sand.u32 %s20, 1
        %s308 = scalar_lea.sflag [#allocation3], %s307
        %s309 = sand.u32 %s133, 1
        %s310 = smul.addr %s309, 384
        %s311 = scalar_lea.vmem [#allocation6], %s310
        // Predicated region
        $region57: #{forward_all.1} parent=47 // pred_check
          %p312 = pneg %p146
        $region58: #{forward_all.1} parent=47 // pred_check_branch
          %314 = sbr.rel (%p312) target = $region60
        $region59: #{forward_all.1} parent=47 // pred_region
          %315 = dma.done %s308, 6144
        $region60: #{forward_all.1} parent=47 // pred_fallthru
          _
        %s316 = sand.u32 %s20, 1
        %s317 = scalar_lea.sflag [#allocation3], %s316
        %s318 = sand.u32 %s159, 1
        %s319 = smul.addr %s318, 6
        %s320 = scalar_lea.vmem [#allocation7], %s319
        // Predicated region
        $region61: #{forward_all.1} parent=47 // pred_check
          %p321 = pneg %p172
        $region62: #{forward_all.1} parent=47 // pred_check_branch
          %323 = sbr.rel (%p321) target = $region64
        $region63: #{forward_all.1} parent=47 // pred_region
          %324 = dma.done %s317, 96
        $region64: #{forward_all.1} parent=47 // pred_fallthru
          _
        %p325 = pneg %p36
        %p326 = pneg %p33
        %p327 = pneg %p57
        %p328 = pneg %p54
        %p329 = pneg %p78
        %p330 = pneg %p75
        %p331 = pneg %p99
        %p332 = pneg %p96
        %p333 = pneg %p120
        %p334 = pneg %p117
        %s335 = sand.u32 %s20, 1
        %s336 = scalar_lea.sflag [#allocation3], %s335
        %s337 = sand.u32 %s133, 1
        %s338 = smul.addr %s337, 384
        %s339 = scalar_lea.vmem [#allocation6], %s338
        %p340 = pneg %p146
        %p341 = pneg %p143
        %s342 = sand.u32 %s20, 1
        %s343 = scalar_lea.sflag [#allocation3], %s342
        %s344 = sand.u32 %s159, 1
        %s345 = smul.addr %s344, 6
        %s346 = scalar_lea.vmem [#allocation7], %s345
        %p347 = pneg %p172
        %p348 = pneg %p169
        %p349 = pneg %p198
        %p350 = pneg %p195
        %s351 = smul.u32 6, %s20
        %p352 = scmp.lt.s32.totalorder %s351, 11
        %s353 = scalar_select %p352, %s351, 11
        %s354 = smul.addr %s353, 8
        %s355 = scalar_lea.vmem %s7, %s354
        %s356 = smul.u32 6, %s20
        %s357 = smul.u32 6, %s20
        %s358 = smul.u32 6, %s20
        %p359 = scmp.lt.s32.totalorder %s358, 11
        %s360 = scalar_select %p359, %s358, 11
        %s361 = smul.addr %s360, 8
        %s362 = scalar_lea.vmem %s7, %s361
        %s363 = smul.u32 6, %s20
        %v364 = vld [vmem:[#allocation2] sm:$0xff]
        %v365 = vld [vmem:[#allocation2 + $0x8] sm:$0xff]
        %v366 = vld [vmem:[#allocation2 + $0x10] sm:$0xff]
        %v367 = vld [vmem:[#allocation2 + $0x18] sm:$0xff]
        %v368 = vld [vmem:[#allocation2 + $0x20] sm:$0xff]
        %v369 = vld [vmem:[#allocation2 + $0x28] sm:$0xff]
        %v370 = vld [vmem:[#allocation2 + $0x30] sm:$0xff]
        %v371 = vld [vmem:[#allocation2 + $0x38] sm:$0xff]
        %v372 = vld [vmem:[%s4] sm:$0xf]
        %v373 = vld [vmem:[%s0] sm:$0x1]
        %vm374 = vcmask 261120
        %v376 = vsel %vm374, %v373, 0
        %378 = vmatprep.subr.mxu0 0.0
        %379 = vmatpush1.msra.mxu0 %v364
        %380 = vmatprep.subr.mxu0 0.0
        %381 = vmatpush1.msra.mxu0 %v365
        %382 = vmatprep.subr.mxu0 0.0
        %383 = vmatpush1.msra.mxu0 %v366
        %384 = vmatprep.subr.mxu0 0.0
        %385 = vmatpush1.msra.mxu0 %v367
        %386 = vmatprep.subr.mxu0 0.0
        %387 = vmatpush1.msra.mxu0 0.0
        %388 = vmatprep.subr.mxu0 0.0
        %389 = vmatpush1.msra.mxu0 0.0
        %390 = vmatprep.subr.mxu0 0.0
        %391 = vmatpush1.msra.mxu0 0.0
        %392 = vmatprep.subr.mxu0 0.0
        %393 = vmatpush1.msra.mxu0 0.0
        %394 = vmatprep.subr.mxu0 0.0
        %395 = vmatpush1.msra.mxu0 0.0
        %396 = vmatprep.subr.mxu0 0.0
        %397 = vmatpush1.msra.mxu0 0.0
        %398 = vmatprep.subr.mxu0 0.0
        %399 = vmatpush1.msra.mxu0 0.0
        %400 = vmatprep.subr.mxu0 0.0
        %401 = vmatpush1.msra.mxu0 0.0
        %402 = vmatprep.subr.mxu0 0.0
        %403 = vmatpush1.msra.mxu0 0.0
        %404 = vmatprep.subr.mxu0 0.0
        %405 = vmatpush1.msra.mxu0 0.0
        %406 = vmatprep.subr.mxu0 0.0
        %407 = vmatpush1.msra.mxu0 0.0
        %408 = vmatprep.subr.mxu0 0.0
        %409 = vmatpush1.msra.mxu0 0.0
        %410 = vmatprep.subr.mxu0 0.0
        %411 = vmatpush1.msra.mxu0 0.0
        %412 = vmatprep.subr.mxu0 0.0
        %413 = vmatpush1.msra.mxu0 0.0
        %414 = vmatprep.subr.mxu0 0.0
        %415 = vmatpush1.msra.mxu0 0.0
        %416 = vmatprep.subr.mxu0 0.0
        %417 = vmatpush1.msra.mxu0 0.0
        %418 = vmatprep.subr.mxu0 0.0
        %419 = vmatpush1.msra.mxu0 0.0
        %420 = vmatprep.subr.mxu0 0.0
        %421 = vmatpush1.msra.mxu0 0.0
        %422 = vmatprep.subr.mxu0 0.0
        %423 = vmatpush1.msra.mxu0 0.0
        %424 = vmatprep.subr.mxu0 0.0
        %425 = vmatpush1.msra.mxu0 0.0
        %426 = vmatprep.subr.mxu0 0.0
        %427 = vmatpush1.msra.mxu0 0.0
        %428 = vmatprep.subr.mxu0 0.0
        %429 = vmatpush1.msra.mxu0 0.0
        %430 = vmatprep.subr.mxu0 0.0
        %431 = vmatpush1.msra.mxu0 0.0
        %432 = vmatprep.subr.mxu0 0.0
        %433 = vmatpush1.msra.mxu0 0.0
        %434 = vmatprep.subr.mxu0 0.0
        %435 = vmatpush1.msra.mxu0 0.0
        %436 = vmatprep.subr.mxu0 0.0
        %437 = vmatpush1.msra.mxu0 0.0
        %438 = vmatprep.subr.mxu0 0.0
        %439 = vmatpush1.msra.mxu0 0.0
        %440 = vmatprep.subr.mxu0 0.0
        %441 = vmatpush1.msra.mxu0 0.0
        %442 = vmatprep.mubr.f32.mxu0 0.0
        %443 = vmatmul.mubr.f32.gmra.mrb[0].mxu0 %v376
        %v444 = vpop.f32.mrb[0].mxu0
        %v445 = vadd.f32 0.0, %v444
        %v446 = vpop.f32.mrb[0].mxu0
        %447 = vdwg.mxu0
        %v448 = vld [vmem:[%s1] sm:$0xff]
        %v450 = vsel %vm374, %v448, 0
        %452 = vmatprep.subr.mxu0 0.0
        %453 = vmatpush1.msra.mxu0 %v368
        %454 = vmatprep.subr.mxu0 0.0
        %455 = vmatpush1.msra.mxu0 %v369
        %456 = vmatprep.subr.mxu0 0.0
        %457 = vmatpush1.msra.mxu0 %v370
        %458 = vmatprep.subr.mxu0 0.0
        %459 = vmatpush1.msra.mxu0 %v371
        %460 = vmatprep.subr.mxu0 0.0
        %461 = vmatpush1.msra.mxu0 0.0
        %462 = vmatprep.subr.mxu0 0.0
        %463 = vmatpush1.msra.mxu0 0.0
        %464 = vmatprep.subr.mxu0 0.0
        %465 = vmatpush1.msra.mxu0 0.0
        %466 = vmatprep.subr.mxu0 0.0
        %467 = vmatpush1.msra.mxu0 0.0
        %468 = vmatprep.subr.mxu0 0.0
        %469 = vmatpush1.msra.mxu0 0.0
        %470 = vmatprep.subr.mxu0 0.0
        %471 = vmatpush1.msra.mxu0 0.0
        %472 = vmatprep.subr.mxu0 0.0
        %473 = vmatpush1.msra.mxu0 0.0
        %474 = vmatprep.subr.mxu0 0.0
        %475 = vmatpush1.msra.mxu0 0.0
        %476 = vmatprep.subr.mxu0 0.0
        %477 = vmatpush1.msra.mxu0 0.0
        %478 = vmatprep.subr.mxu0 0.0
        %479 = vmatpush1.msra.mxu0 0.0
        %480 = vmatprep.subr.mxu0 0.0
        %481 = vmatpush1.msra.mxu0 0.0
        %482 = vmatprep.subr.mxu0 0.0
        %483 = vmatpush1.msra.mxu0 0.0
        %484 = vmatprep.subr.mxu0 0.0
        %485 = vmatpush1.msra.mxu0 0.0
        %486 = vmatprep.subr.mxu0 0.0
        %487 = vmatpush1.msra.mxu0 0.0
        %488 = vmatprep.subr.mxu0 0.0
        %489 = vmatpush1.msra.mxu0 0.0
        %490 = vmatprep.subr.mxu0 0.0
        %491 = vmatpush1.msra.mxu0 0.0
        %492 = vmatprep.subr.mxu0 0.0
        %493 = vmatpush1.msra.mxu0 0.0
        %494 = vmatprep.subr.mxu0 0.0
        %495 = vmatpush1.msra.mxu0 0.0
        %496 = vmatprep.subr.mxu0 0.0
        %497 = vmatpush1.msra.mxu0 0.0
        %498 = vmatprep.subr.mxu0 0.0
        %499 = vmatpush1.msra.mxu0 0.0
        %500 = vmatprep.subr.mxu0 0.0
        %501 = vmatpush1.msra.mxu0 0.0
        %502 = vmatprep.subr.mxu0 0.0
        %503 = vmatpush1.msra.mxu0 0.0
        %504 = vmatprep.subr.mxu0 0.0
        %505 = vmatpush1.msra.mxu0 0.0
        %506 = vmatprep.subr.mxu0 0.0
        %507 = vmatpush1.msra.mxu0 0.0
        %508 = vmatprep.subr.mxu0 0.0
        %509 = vmatpush1.msra.mxu0 0.0
        %510 = vmatprep.subr.mxu0 0.0
        %511 = vmatpush1.msra.mxu0 0.0
        %512 = vmatprep.subr.mxu0 0.0
        %513 = vmatpush1.msra.mxu0 0.0
        %514 = vmatprep.subr.mxu0 0.0
        %515 = vmatpush1.msra.mxu0 0.0
        %516 = vmatprep.mubr.f32.mxu0 0.0
        %517 = vmatmul.mubr.f32.gmra.mrb[0].mxu0 %v450
        %v518 = vpop.f32.mrb[0].mxu0
        %v519 = vadd.f32 0.0, %v518
        %v520 = vpop.f32.mrb[0].mxu0
        %521 = vdwg.mxu0
        %v522 = vlaneseq
        %v523 = vshrl.u32 %v522, 7
        %v524 = vsub.s32 0, %v523
        %v525 = vrot.slane %v445, %v524
        %v526 = vadd.f32 %v525, %v519
        %v527 = vlaneseq
        %v528 = vshrl.u32 %v527, 7
        %v529 = vsub.s32 0, %v528
        %v530 = vrot.slane %v372, %v529
        %v531 = vadd.f32 %v526, %v530
        %v532 = vmax.f32 %v531, 0.0
        %v533 = vld [vmem:[#allocation4] sm:$0xff]
        %v534 = vld [vmem:[#allocation4 + $0x8] sm:$0xff]
        %v535 = vld [vmem:[#allocation4 + $0x10] sm:$0xff]
        %v536 = vld [vmem:[#allocation4 + $0x18] sm:$0xff]
        %v537 = vld [vmem:[#allocation4 + $0x20] sm:$0xff]
        %v538 = vld [vmem:[#allocation4 + $0x28] sm:$0xff]
        %v539 = vld [vmem:[#allocation4 + $0x30] sm:$0xff]
        %v540 = vld [vmem:[#allocation4 + $0x38] sm:$0xff]
        %v541 = vlaneseq
        %v542 = vshrl.u32 %v541, 7
        %v543 = vsub.s32 1, %v542
        %v544 = vrot.slane %v372, %v543
        %vm545 = vcmask 523264
        %v547 = vsel %vm545, %v532, 0
        %549 = vmatprep.subr.mxu0 0.0
        %550 = vmatpush1.msra.mxu0 %v533
        %551 = vmatprep.subr.mxu0 0.0
        %552 = vmatpush1.msra.mxu0 %v534
        %553 = vmatprep.subr.mxu0 0.0
        %554 = vmatpush1.msra.mxu0 %v535
        %555 = vmatprep.subr.mxu0 0.0
        %556 = vmatpush1.msra.mxu0 %v536
        %557 = vmatprep.subr.mxu0 0.0
        %558 = vmatpush1.msra.mxu0 %v537
        %559 = vmatprep.subr.mxu0 0.0
        %560 = vmatpush1.msra.mxu0 %v538
        %561 = vmatprep.subr.mxu0 0.0
        %562 = vmatpush1.msra.mxu0 %v539
        %563 = vmatprep.subr.mxu0 0.0
        %564 = vmatpush1.msra.mxu0 %v540
        %565 = vmatprep.subr.mxu0 0.0
        %566 = vmatpush1.msra.mxu0 0.0
        %567 = vmatprep.subr.mxu0 0.0
        %568 = vmatpush1.msra.mxu0 0.0
        %569 = vmatprep.subr.mxu0 0.0
        %570 = vmatpush1.msra.mxu0 0.0
        %571 = vmatprep.subr.mxu0 0.0
        %572 = vmatpush1.msra.mxu0 0.0
        %573 = vmatprep.subr.mxu0 0.0
        %574 = vmatpush1.msra.mxu0 0.0
        %575 = vmatprep.subr.mxu0 0.0
        %576 = vmatpush1.msra.mxu0 0.0
        %577 = vmatprep.subr.mxu0 0.0
        %578 = vmatpush1.msra.mxu0 0.0
        %579 = vmatprep.subr.mxu0 0.0
        %580 = vmatpush1.msra.mxu0 0.0
        %581 = vmatprep.subr.mxu0 0.0
        %582 = vmatpush1.msra.mxu0 0.0
        %583 = vmatprep.subr.mxu0 0.0
        %584 = vmatpush1.msra.mxu0 0.0
        %585 = vmatprep.subr.mxu0 0.0
        %586 = vmatpush1.msra.mxu0 0.0
        %587 = vmatprep.subr.mxu0 0.0
        %588 = vmatpush1.msra.mxu0 0.0
        %589 = vmatprep.subr.mxu0 0.0
        %590 = vmatpush1.msra.mxu0 0.0
        %591 = vmatprep.subr.mxu0 0.0
        %592 = vmatpush1.msra.mxu0 0.0
        %593 = vmatprep.subr.mxu0 0.0
        %594 = vmatpush1.msra.mxu0 0.0
        %595 = vmatprep.subr.mxu0 0.0
        %596 = vmatpush1.msra.mxu0 0.0
        %597 = vmatprep.subr.mxu0 0.0
        %598 = vmatpush1.msra.mxu0 0.0
        %599 = vmatprep.subr.mxu0 0.0
        %600 = vmatpush1.msra.mxu0 0.0
        %601 = vmatprep.subr.mxu0 0.0
        %602 = vmatpush1.msra.mxu0 0.0
        %603 = vmatprep.subr.mxu0 0.0
        %604 = vmatpush1.msra.mxu0 0.0
        %605 = vmatprep.subr.mxu0 0.0
        %606 = vmatpush1.msra.mxu0 0.0
        %607 = vmatprep.subr.mxu0 0.0
        %608 = vmatpush1.msra.mxu0 0.0
        %609 = vmatprep.subr.mxu0 0.0
        %610 = vmatpush1.msra.mxu0 0.0
        %611 = vmatprep.subr.mxu0 0.0
        %612 = vmatpush1.msra.mxu0 0.0
        %613 = vmatprep.mubr.f32.mxu0 0.0
        %614 = vmatmul.mubr.f32.gmra.mrb[0].mxu0 %v547
        %v615 = vpop.f32.mrb[0].mxu0
        %v616 = vadd.f32 %v544, %v615
        %v617 = vpop.f32.mrb[0].mxu0
        %618 = vdwg.mxu0
        %v619 = vsel %vm545, %v616, 0.0
        %620 = vadd.xlane.f32.xlu0 %v619
        %v621 = vpop.xlane.xlu0 %620
        %v622 = vrcp.pop 64.0
        %v623 = vmul.f32 %v621, %v622
        %v624 = vsub.f32 %v616, %v623
        %v625 = vmul.f32 %v624, %v624
        %v626 = vsel %vm545, %v625, 0.0
        %627 = vadd.xlane.f32.xlu0 %v626
        %v628 = vpop.xlane.xlu0 %627
        %v629 = vmul.f32 %v628, %v622
        %v630 = vadd.f32 %v629, 1e-06
        %v631 = vrsqrt.pop %v630
        %v632 = vmul.f32 %v624, %v631
        %v633 = vlaneseq
        %v634 = vshrl.u32 %v633, 7
        %v635 = vsub.s32 2, %v634
        %v636 = vrot.slane %v372, %v635
        %v637 = vmul.f32 %v632, %v636
        %v638 = vlaneseq
        %v639 = vshrl.u32 %v638, 7
        %v640 = vsub.s32 3, %v639
        %v641 = vrot.slane %v372, %v640
        %v642 = vadd.f32 %v637, %v641
        %v643 = vld [vmem:[%s311] sm:$0xff]
        %v644 = vld [vmem:[%s311 + $0x8] sm:$0xff]
        %v645 = vld [vmem:[%s311 + $0x10] sm:$0xff]
        %v646 = vld [vmem:[%s311 + $0x18] sm:$0xff]
        %v647 = vld [vmem:[%s311 + $0x20] sm:$0xff]
        %v648 = vld [vmem:[%s311 + $0x28] sm:$0xff]
        %v649 = vld [vmem:[%s311 + $0x30] sm:$0xff]
        %v650 = vld [vmem:[%s311 + $0x38] sm:$0xff]
        %v651 = vld [vmem:[%s311 + $0x40] sm:$0xff]
        %v652 = vld [vmem:[%s311 + $0x48] sm:$0xff]
        %v653 = vld [vmem:[%s311 + $0x50] sm:$0xff]
        %v654 = vld [vmem:[%s311 + $0x58] sm:$0xff]
        %v655 = vld [vmem:[%s311 + $0x60] sm:$0xff]
        %v656 = vld [vmem:[%s311 + $0x68] sm:$0xff]
        %v657 = vld [vmem:[%s311 + $0x70] sm:$0xff]
        %v658 = vld [vmem:[%s311 + $0x78] sm:$0xff]
        %v659 = vld [vmem:[%s311 + $0x80] sm:$0xff]
        %v660 = vld [vmem:[%s311 + $0x88] sm:$0xff]
        %v661 = vld [vmem:[%s311 + $0x90] sm:$0xff]
        %v662 = vld [vmem:[%s311 + $0x98] sm:$0xff]
        %v663 = vld [vmem:[%s311 + $0xa0] sm:$0xff]
        %v664 = vld [vmem:[%s311 + $0xa8] sm:$0xff]
        %v665 = vld [vmem:[%s311 + $0xb0] sm:$0xff]
        %v666 = vld [vmem:[%s311 + $0xb8] sm:$0xff]
        %v667 = vld [vmem:[%s311 + $0xc0] sm:$0xff]
        %v668 = vld [vmem:[%s311 + $0xc8] sm:$0xff]
        %v669 = vld [vmem:[%s311 + $0xd0] sm:$0xff]
        %v670 = vld [vmem:[%s311 + $0xd8] sm:$0xff]
        %v671 = vld [vmem:[%s311 + $0xe0] sm:$0xff]
        %v672 = vld [vmem:[%s311 + $0xe8] sm:$0xff]
        %v673 = vld [vmem:[%s311 + $0xf0] sm:$0xff]
        %v674 = vld [vmem:[%s311 + $0xf8] sm:$0xff]
        %v675 = vld [vmem:[%s311 + $0x100] sm:$0xff]
        %v676 = vld [vmem:[%s311 + $0x108] sm:$0xff]
        %v677 = vld [vmem:[%s311 + $0x110] sm:$0xff]
        %v678 = vld [vmem:[%s311 + $0x118] sm:$0xff]
        %v679 = vld [vmem:[%s311 + $0x120] sm:$0xff]
        %v680 = vld [vmem:[%s311 + $0x128] sm:$0xff]
        %v681 = vld [vmem:[%s311 + $0x130] sm:$0xff]
        %v682 = vld [vmem:[%s311 + $0x138] sm:$0xff]
        %v683 = vld [vmem:[%s311 + $0x140] sm:$0xff]
        %v684 = vld [vmem:[%s311 + $0x148] sm:$0xff]
        %v685 = vld [vmem:[%s311 + $0x150] sm:$0xff]
        %v686 = vld [vmem:[%s311 + $0x158] sm:$0xff]
        %v687 = vld [vmem:[%s311 + $0x160] sm:$0xff]
        %v688 = vld [vmem:[%s311 + $0x168] sm:$0xff]
        %v689 = vld [vmem:[%s311 + $0x170] sm:$0xff]
        %v690 = vld [vmem:[%s311 + $0x178] sm:$0xff]
        %v691 = vld [vmem:[%s320] sm:$0x3f]
        %v693 = vlaneseq
        %v694 = vshrl.u32 %v693, 7
        %v695 = vsub.s32 0, %v694
        %v696 = vrot.slane %v691, %v695
        %v697 = vlaneseq
        %v698 = vshrl.u32 %v697, 7
        %v699 = vsub.s32 1, %v698
        %v700 = vrot.slane %v691, %v699
        %v701 = vlaneseq
        %v702 = vshrl.u32 %v701, 7
        %v703 = vsub.s32 2, %v702
        %v704 = vrot.slane %v691, %v703
        %v705 = vlaneseq
        %v706 = vshrl.u32 %v705, 7
        %v707 = vsub.s32 3, %v706
        %v708 = vrot.slane %v691, %v707
        %v709 = vlaneseq
        %v710 = vshrl.u32 %v709, 7
        %v711 = vsub.s32 4, %v710
        %v712 = vrot.slane %v691, %v711
        %v713 = vlaneseq
        %v714 = vshrl.u32 %v713, 7
        %v715 = vsub.s32 5, %v714
        %v716 = vrot.slane %v691, %v715
        %v724 = vsel %vm545, %v642, 0
        %726 = vmatprep.subr.mxu0 %v644
        %727 = vmatpush1.msra.mxu0 %v643
        %728 = vmatprep.subr.mxu0 %v650
        %729 = vmatpush1.msra.mxu0 %v649
        %730 = vmatprep.subr.mxu0 %v656
        %731 = vmatpush1.msra.mxu0 %v655
        %732 = vmatprep.subr.mxu0 %v662
        %733 = vmatpush1.msra.mxu0 %v661
        %734 = vmatprep.subr.mxu0 %v668
        %735 = vmatpush1.msra.mxu0 %v667
        %736 = vmatprep.subr.mxu0 %v674
        %737 = vmatpush1.msra.mxu0 %v673
        %738 = vmatprep.subr.mxu0 %v680
        %739 = vmatpush1.msra.mxu0 %v679
        %740 = vmatprep.subr.mxu0 %v686
        %741 = vmatpush1.msra.mxu0 %v685
        %742 = vmatprep.subr.mxu0 0.0
        %743 = vmatpush1.msra.mxu0 0.0
        %744 = vmatprep.subr.mxu0 0.0
        %745 = vmatpush1.msra.mxu0 0.0
        %746 = vmatprep.subr.mxu0 0.0
        %747 = vmatpush1.msra.mxu0 0.0
        %748 = vmatprep.subr.mxu0 0.0
        %749 = vmatpush1.msra.mxu0 0.0
        %750 = vmatprep.subr.mxu0 0.0
        %751 = vmatpush1.msra.mxu0 0.0
        %752 = vmatprep.subr.mxu0 0.0
        %753 = vmatpush1.msra.mxu0 0.0
        %754 = vmatprep.subr.mxu0 0.0
        %755 = vmatpush1.msra.mxu0 0.0
        %756 = vmatprep.subr.mxu0 0.0
        %757 = vmatpush1.msra.mxu0 0.0
        %758 = vmatprep.subr.mxu0 0.0
        %759 = vmatpush1.msra.mxu0 0.0
        %760 = vmatprep.subr.mxu0 0.0
        %761 = vmatpush1.msra.mxu0 0.0
        %762 = vmatprep.subr.mxu0 0.0
        %763 = vmatpush1.msra.mxu0 0.0
        %764 = vmatprep.subr.mxu0 0.0
        %765 = vmatpush1.msra.mxu0 0.0
        %766 = vmatprep.subr.mxu0 0.0
        %767 = vmatpush1.msra.mxu0 0.0
        %768 = vmatprep.subr.mxu0 0.0
        %769 = vmatpush1.msra.mxu0 0.0
        %770 = vmatprep.subr.mxu0 0.0
        %771 = vmatpush1.msra.mxu0 0.0
        %772 = vmatprep.subr.mxu0 0.0
        %773 = vmatpush1.msra.mxu0 0.0
        %774 = vmatprep.subr.mxu0 0.0
        %775 = vmatpush1.msra.mxu0 0.0
        %776 = vmatprep.subr.mxu0 0.0
        %777 = vmatpush1.msra.mxu0 0.0
        %778 = vmatprep.subr.mxu0 0.0
        %779 = vmatpush1.msra.mxu0 0.0
        %780 = vmatprep.subr.mxu0 0.0
        %781 = vmatpush1.msra.mxu0 0.0
        %782 = vmatprep.subr.mxu0 0.0
        %783 = vmatpush1.msra.mxu0 0.0
        %784 = vmatprep.subr.mxu0 0.0
        %785 = vmatpush1.msra.mxu0 0.0
        %786 = vmatprep.subr.mxu0 0.0
        %787 = vmatpush1.msra.mxu0 0.0
        %788 = vmatprep.subr.mxu0 0.0
        %789 = vmatpush1.msra.mxu0 0.0
        %790 = vmatprep.mubr.f32.mxu0 0.0
        %791 = vmatmul.mubr.f32.gmra.mrb[0].mxu0 %v724
        %v792 = vpop.f32.mrb[0].mxu0
        %v793 = vadd.f32 %v696, %v792
        %v794 = vpop.f32.mrb[0].mxu0
        %v795 = vadd.f32 %v700, %v794
        %796 = vdwg.mxu0
        %797 = vmatprep.subr.mxu0 %v646
        %798 = vmatpush1.msra.mxu0 %v645
        %799 = vmatprep.subr.mxu0 %v652
        %800 = vmatpush1.msra.mxu0 %v651
        %801 = vmatprep.subr.mxu0 %v658
        %802 = vmatpush1.msra.mxu0 %v657
        %803 = vmatprep.subr.mxu0 %v664
        %804 = vmatpush1.msra.mxu0 %v663
        %805 = vmatprep.subr.mxu0 %v670
        %806 = vmatpush1.msra.mxu0 %v669
        %807 = vmatprep.subr.mxu0 %v676
        %808 = vmatpush1.msra.mxu0 %v675
        %809 = vmatprep.subr.mxu0 %v682
        %810 = vmatpush1.msra.mxu0 %v681
        %811 = vmatprep.subr.mxu0 %v688
        %812 = vmatpush1.msra.mxu0 %v687
        %813 = vmatprep.subr.mxu0 0.0
        %814 = vmatpush1.msra.mxu0 0.0
        %815 = vmatprep.subr.mxu0 0.0
        %816 = vmatpush1.msra.mxu0 0.0
        %817 = vmatprep.subr.mxu0 0.0
        %818 = vmatpush1.msra.mxu0 0.0
        %819 = vmatprep.subr.mxu0 0.0
        %820 = vmatpush1.msra.mxu0 0.0
        %821 = vmatprep.subr.mxu0 0.0
        %822 = vmatpush1.msra.mxu0 0.0
        %823 = vmatprep.subr.mxu0 0.0
        %824 = vmatpush1.msra.mxu0 0.0
        %825 = vmatprep.subr.mxu0 0.0
        %826 = vmatpush1.msra.mxu0 0.0
        %827 = vmatprep.subr.mxu0 0.0
        %828 = vmatpush1.msra.mxu0 0.0
        %829 = vmatprep.subr.mxu0 0.0
        %830 = vmatpush1.msra.mxu0 0.0
        %831 = vmatprep.subr.mxu0 0.0
        %832 = vmatpush1.msra.mxu0 0.0
        %833 = vmatprep.subr.mxu0 0.0
        %834 = vmatpush1.msra.mxu0 0.0
        %835 = vmatprep.subr.mxu0 0.0
        %836 = vmatpush1.msra.mxu0 0.0
        %837 = vmatprep.subr.mxu0 0.0
        %838 = vmatpush1.msra.mxu0 0.0
        %839 = vmatprep.subr.mxu0 0.0
        %840 = vmatpush1.msra.mxu0 0.0
        %841 = vmatprep.subr.mxu0 0.0
        %842 = vmatpush1.msra.mxu0 0.0
        %843 = vmatprep.subr.mxu0 0.0
        %844 = vmatpush1.msra.mxu0 0.0
        %845 = vmatprep.subr.mxu0 0.0
        %846 = vmatpush1.msra.mxu0 0.0
        %847 = vmatprep.subr.mxu0 0.0
        %848 = vmatpush1.msra.mxu0 0.0
        %849 = vmatprep.subr.mxu0 0.0
        %850 = vmatpush1.msra.mxu0 0.0
        %851 = vmatprep.subr.mxu0 0.0
        %852 = vmatpush1.msra.mxu0 0.0
        %853 = vmatprep.subr.mxu0 0.0
        %854 = vmatpush1.msra.mxu0 0.0
        %855 = vmatprep.subr.mxu0 0.0
        %856 = vmatpush1.msra.mxu0 0.0
        %857 = vmatprep.subr.mxu0 0.0
        %858 = vmatpush1.msra.mxu0 0.0
        %859 = vmatprep.subr.mxu0 0.0
        %860 = vmatpush1.msra.mxu0 0.0
        %861 = vmatprep.mubr.f32.mxu0 0.0
        %862 = vmatmul.mubr.f32.gmra.mrb[0].mxu0 %v724
        %v863 = vpop.f32.mrb[0].mxu0
        %v864 = vadd.f32 %v704, %v863
        %v865 = vpop.f32.mrb[0].mxu0
        %v866 = vadd.f32 %v708, %v865
        %867 = vdwg.mxu0
        %868 = vmatprep.subr.mxu0 %v648
        %869 = vmatpush1.msra.mxu0 %v647
        %870 = vmatprep.subr.mxu0 %v654
        %871 = vmatpush1.msra.mxu0 %v653
        %872 = vmatprep.subr.mxu0 %v660
        %873 = vmatpush1.msra.mxu0 %v659
        %874 = vmatprep.subr.mxu0 %v666
        %875 = vmatpush1.msra.mxu0 %v665
        %876 = vmatprep.subr.mxu0 %v672
        %877 = vmatpush1.msra.mxu0 %v671
        %878 = vmatprep.subr.mxu0 %v678
        %879 = vmatpush1.msra.mxu0 %v677
        %880 = vmatprep.subr.mxu0 %v684
        %881 = vmatpush1.msra.mxu0 %v683
        %882 = vmatprep.subr.mxu0 %v690
        %883 = vmatpush1.msra.mxu0 %v689
        %884 = vmatprep.subr.mxu0 0.0
        %885 = vmatpush1.msra.mxu0 0.0
        %886 = vmatprep.subr.mxu0 0.0
        %887 = vmatpush1.msra.mxu0 0.0
        %888 = vmatprep.subr.mxu0 0.0
        %889 = vmatpush1.msra.mxu0 0.0
        %890 = vmatprep.subr.mxu0 0.0
        %891 = vmatpush1.msra.mxu0 0.0
        %892 = vmatprep.subr.mxu0 0.0
        %893 = vmatpush1.msra.mxu0 0.0
        %894 = vmatprep.subr.mxu0 0.0
        %895 = vmatpush1.msra.mxu0 0.0
        %896 = vmatprep.subr.mxu0 0.0
        %897 = vmatpush1.msra.mxu0 0.0
        %898 = vmatprep.subr.mxu0 0.0
        %899 = vmatpush1.msra.mxu0 0.0
        %900 = vmatprep.subr.mxu0 0.0
        %901 = vmatpush1.msra.mxu0 0.0
        %902 = vmatprep.subr.mxu0 0.0
        %903 = vmatpush1.msra.mxu0 0.0
        %904 = vmatprep.subr.mxu0 0.0
        %905 = vmatpush1.msra.mxu0 0.0
        %906 = vmatprep.subr.mxu0 0.0
        %907 = vmatpush1.msra.mxu0 0.0
        %908 = vmatprep.subr.mxu0 0.0
        %909 = vmatpush1.msra.mxu0 0.0
        %910 = vmatprep.subr.mxu0 0.0
        %911 = vmatpush1.msra.mxu0 0.0
        %912 = vmatprep.subr.mxu0 0.0
        %913 = vmatpush1.msra.mxu0 0.0
        %914 = vmatprep.subr.mxu0 0.0
        %915 = vmatpush1.msra.mxu0 0.0
        %916 = vmatprep.subr.mxu0 0.0
        %917 = vmatpush1.msra.mxu0 0.0
        %918 = vmatprep.subr.mxu0 0.0
        %919 = vmatpush1.msra.mxu0 0.0
        %920 = vmatprep.subr.mxu0 0.0
        %921 = vmatpush1.msra.mxu0 0.0
        %922 = vmatprep.subr.mxu0 0.0
        %923 = vmatpush1.msra.mxu0 0.0
        %924 = vmatprep.subr.mxu0 0.0
        %925 = vmatpush1.msra.mxu0 0.0
        %926 = vmatprep.subr.mxu0 0.0
        %927 = vmatpush1.msra.mxu0 0.0
        %928 = vmatprep.subr.mxu0 0.0
        %929 = vmatpush1.msra.mxu0 0.0
        %930 = vmatprep.subr.mxu0 0.0
        %931 = vmatpush1.msra.mxu0 0.0
        %932 = vmatprep.mubr.f32.mxu0 0.0
        %933 = vmatmul.mubr.f32.gmra.mrb[0].mxu0 %v724
        %v934 = vpop.f32.mrb[0].mxu0
        %v935 = vadd.f32 %v712, %v934
        %v936 = vpop.f32.mrb[0].mxu0
        %v937 = vadd.f32 %v716, %v936
        %938 = vdwg.mxu0
        %939 = vst [vmem:[%s362] sm:$0xff] %v793
        %940 = vst [vmem:[%s362 + $0x8] sm:$0xff] %v795
        %941 = vst [vmem:[%s362 + $0x10] sm:$0xff] %v864
        %942 = vst [vmem:[%s362 + $0x18] sm:$0xff] %v866
        %943 = vst [vmem:[%s362 + $0x20] sm:$0xff] %v935
        %944 = vst [vmem:[%s362 + $0x28] sm:$0xff] %v937
        %s945 = smul.u32 6, %s20
        %p946 = scmp.lt.s32.totalorder %s945, 11
        %s947 = scalar_select %p946, %s945, 11
        %s948 = smul.addr %s947, 8
        %s949 = scalar_lea.vmem %s7, %s948
        // Predicated region
        $region65: #{forward_all.1} parent=47 // pred_check
          %p950 = pneg %p195
        $region66: #{forward_all.1} parent=47 // pred_check_branch
          %952 = sbr.rel (%p950) target = $region68
        $region67: #{forward_all.1} parent=47 // pred_region
          %s953 = smul.u32 6, %s20
        $region68: #{forward_all.1} parent=47 // pred_fallthru
          _
      $region48: #{forward_all.1} parent=5 // pred_fallthru
        _
      %p954 = scmp.le.s32.totalorder 2, %s15
      // Predicated region
      $region69: #{forward_all.1} parent=5 // pred_check
        %p955 = pneg %p954
      $region70: #{forward_all.1} parent=5 // pred_check_branch
        %957 = sbr.rel (%p955) target = $region72
      $region71: #{forward_all.1} parent=5 // pred_region
        %s958 = ssub.s32 %s15, 2
        // Predicated region
        $region73: #{forward_all.1} parent=71 // pred_check
          %p959 = pneg %p201
        $region74: #{forward_all.1} parent=71 // pred_check_branch
          %961 = sbr.rel (%p959) target = $region76
        $region75: #{forward_all.1} parent=71 // pred_region
          %s962 = smul.u32 6, %s21
          %p963 = scmp.lt.s32.totalorder %s962, 11
          %s964 = scalar_select %p963, %s962, 11
          %s965 = smul.addr %s964, 8
          %s966 = scalar_lea.vmem %s7, %s965
        $region76: #{forward_all.1} parent=71 // pred_fallthru
          _
      $region72: #{forward_all.1} parent=5 // pred_fallthru
        _
    $region6: #{forward_all.1} parent=1 // loop_footer
      %s19 = sadd.s32 1, %s15
    $region7: #{forward_all.1} parent=1 // loop_footer_branch
      %14 = sbr.rel target = $region3
    $region8: #{forward_all.1} parent=1 // loop_exit
      _
    %967 = vsyncpa [#allocation3], 1
    %s968 = scalar_lea.sflag [#allocation3], 1
    %969 = vsyncpa %s968, 1
    %970 = vsyncpa [#allocation5], 1

</llo_original>
